<compile_context>
chip_gen: v6e
topology: v6e:2x2x1
jax: 0.10.0
libtpu: 0.0.40
codegen_flags: <defaults>
</compile_context>

<pallas_src>
import functools

import jax
import jax.numpy as jnp
from jax.experimental import pallas as pl
from jax.experimental.pallas import tpu as pltpu

STATE_SIZE = 8     # LunarLander-v2 observation dim
ACTION_SIZE = 4    # LunarLander-v2 action dim
HIDDEN = 64
_OUT_ROWS = 8      # ACTION_SIZE padded up to a full sublane group (unmasked stores)


def _mlp_kernel(x_ref, w1_ref, b1_ref, w2_ref, b2_ref, w3_ref, b3_ref, o_ref):
    # x_ref: (tb, 8) batch-major tile.  Transpose in-kernel to lane-dense
    # (8, tb) -- this rides the XLU slot instead of costing a wrapper-side
    # HBM read+write of the whole input.
    x = x_ref[...].T                                                     # (8,  tb)
    # Biases are (out, 1) columns and broadcast along lanes for free.
    h1 = jnp.dot(w1_ref[...], x, preferred_element_type=jnp.float32) + b1_ref[...]
    h1 = jnp.maximum(h1, 0.0)                                            # (64, tb)
    h2 = jnp.dot(w2_ref[...], h1, preferred_element_type=jnp.float32) + b2_ref[...]
    h2 = jnp.maximum(h2, 0.0)                                            # (64, tb)
    out = jnp.dot(w3_ref[...], h2, preferred_element_type=jnp.float32) + b3_ref[...]
    o_ref[...] = out.astype(o_ref.dtype)                                 # (8,  tb)


def _pick_tile(b128, block_b):
    """Pick a batch-lane tile that divides b128 (waste < 128 lanes), is at most
    block_b, and leaves >= 2 grid steps whenever b128 >= 256 (v7x megacore)."""
    n = b128 // 128                      # number of 128-lane groups
    cap = max(1, block_b // 128)
    if n >= 2:
        cap = min(cap, n // 2)           # >= 2 grid steps -> both v7x TCs busy
    cap = min(cap, n)
    d = cap
    while n % d:                         # largest divisor of n that is <= cap
        d -= 1
    return 128 * d


@functools.partial(jax.jit, static_argnames=("block_b",))
def network_forward_lane_dense(state, params, *, block_b=4096):
    """state: (B, STATE_SIZE) float32.

    Returns the lane-dense Q slab of shape (_OUT_ROWS, B_padded) where
    rows [0:ACTION_SIZE] hold the Q-values and columns [0:B] are real samples.
    Consumers (greedy argmax, Q(s,a) gather) can use this layout directly and
    skip the output transpose entirely.
    """
    w1, b1, w2, b2, w3p, b3p = params
    B = state.shape[0]

    # Pad the batch only up to the next multiple of 128 lanes (waste < 128),
    # then tile with a divisor of that padded size.
    b128 = pl.cdiv(B, 128) * 128
    tb = _pick_tile(b128, block_b)
    x = state
    if b128 != B:
        x = jnp.pad(x, ((0, b128 - B), (0, 0)))                          # (b128, 8)

    grid = (b128 // tb,)

    # Weights/biases: constant block index -> fetched once, stay VMEM-resident.
    resident = lambda a: pl.BlockSpec(a.shape, lambda i: (0, 0))

    flops = 2 * b128 * (STATE_SIZE * HIDDEN + HIDDEN * HIDDEN + HIDDEN * _OUT_ROWS)
    bytes_accessed = (
        x.size * x.dtype.itemsize
        + b128 * _OUT_ROWS * 4
        + sum(a.size * a.dtype.itemsize for a in (w1, b1, w2, b2, w3p, b3p))
    )

    out_t = pl.pallas_call(
        _mlp_kernel,
        out_shape=jax.ShapeDtypeStruct((_OUT_ROWS, b128), jnp.float32),
        grid=grid,
        in_specs=[
            pl.BlockSpec((tb, STATE_SIZE), lambda i: (i, 0)),   # activations, tiled on batch
            resident(w1), resident(b1),
            resident(w2), resident(b2),
            resident(w3p), resident(b3p),
        ],
        out_specs=pl.BlockSpec((_OUT_ROWS, tb), lambda i: (0, i)),
        compiler_params=pltpu.CompilerParams(
            dimension_semantics=("parallel",),   # shard batch blocks across v7x cores
        ),
        cost_estimate=pl.CostEstimate(
            flops=flops, transcendentals=0, bytes_accessed=bytes_accessed),
    )(x, w1, b1, w2, b2, w3p, b3p)

    return out_t


@functools.partial(jax.jit, static_argnames=("block_b",))
def network_forward(state, params, *, block_b=4096):
    """Module-parity API: returns Q-values of shape (B, ACTION_SIZE), matching
    the PyTorch `Network.forward`.  Prefer `network_forward_lane_dense` when the
    consumer can work directly in the lane-dense layout."""
    B = state.shape[0]
    q = network_forward_lane_dense(state, params, block_b=block_b)
    return q[:ACTION_SIZE, :B].T


def init_params(key):
    """Deterministic init mimicking PyTorch nn.Linear default:
    U(-1/sqrt(fan_in), 1/sqrt(fan_in)).  Weights kept in PyTorch (out, in)
    layout; biases stored as (out, 1) columns; fc3 is zero-padded to
    (_OUT_ROWS, ...) once here so no per-call pad ops run on the hot path."""
    def linear(key, fan_in, fan_out):
        kw, kb = jax.random.split(key)
        bound = 1.0 / jnp.sqrt(jnp.float32(fan_in))
        w = jax.random.uniform(kw, (fan_out, fan_in), jnp.float32, -bound, bound)
        b = jax.random.uniform(kb, (fan_out, 1), jnp.float32, -bound, bound)
        return w, b

    k1, k2, k3 = jax.random.split(key, 3)
    w1, b1 = linear(k1, STATE_SIZE, HIDDEN)
    w2, b2 = linear(k2, HIDDEN, HIDDEN)
    w3, b3 = linear(k3, HIDDEN, ACTION_SIZE)
    w3p = jnp.zeros((_OUT_ROWS, HIDDEN), w3.dtype).at[:ACTION_SIZE].set(w3)
    b3p = jnp.zeros((_OUT_ROWS, 1), b3.dtype).at[:ACTION_SIZE].set(b3)
    return (w1, b1, w2, b2, w3p, b3p)


def _reference(state, params):
    w1, b1, w2, b2, w3p, b3p = params
    h = jnp.maximum(state @ w1.T + b1.T, 0.0)
    h = jnp.maximum(h @ w2.T + b2.T, 0.0)
    return h @ w3p[:ACTION_SIZE].T + b3p[:ACTION_SIZE].T


if __name__ == "__main__":
    key = jax.random.PRNGKey(0)
    k_params, k_small, k_big = jax.random.split(key, 3)

    params = init_params(k_params)

    # Small deterministic example (module-consistent shapes).
    B = 2
    state = jax.random.normal(k_small, (B, STATE_SIZE), dtype=jnp.float32)
    q_values = jax.block_until_ready(network_forward(state, params))
    assert q_values.shape == (B, ACTION_SIZE)
    assert jnp.allclose(q_values, _reference(state, params), atol=1e-5, rtol=1e-5)

    # Batched replay-sized forward: exercises the multi-step grid and the
    # (B not multiple of 128) tail handling.
    B2 = 300
    state2 = jax.random.normal(k_big, (B2, STATE_SIZE), dtype=jnp.float32)
    q2 = jax.block_until_ready(network_forward(state2, params))
    assert q2.shape == (B2, ACTION_SIZE)
    ref2 = _reference(state2, params)
    assert jnp.allclose(q2, ref2, atol=1e-5, rtol=1e-5)

    # Lane-dense consumer path: greedy actions straight off the (8, B_padded)
    # slab (no output transpose needed).
    slab = jax.block_until_ready(network_forward_lane_dense(state2, params))
    greedy = jnp.argmax(slab[:ACTION_SIZE, :B2], axis=0)
    assert jnp.array_equal(greedy, jnp.argmax(ref2, axis=1))

    print("KERNEL_OK")
</pallas_src>

<mosaic_0001>
module attributes {stable_mosaic.version = 11 : i64} {
  func.func @_mlp_kernel(%arg0: i32, %arg1: memref<128x8xf32, #tpu.memory_space<vmem>>, %arg2: memref<64x8xf32, #tpu.memory_space<vmem>>, %arg3: memref<64x1xf32, #tpu.memory_space<vmem>>, %arg4: memref<64x64xf32, #tpu.memory_space<vmem>>, %arg5: memref<64x1xf32, #tpu.memory_space<vmem>>, %arg6: memref<8x64xf32, #tpu.memory_space<vmem>>, %arg7: memref<8x1xf32, #tpu.memory_space<vmem>>, %arg8: memref<8x128xf32, #tpu.memory_space<vmem>>) attributes {dimension_semantics = [#tpu.dimension_semantics<parallel>], iteration_bounds = array<i64: 1>, scalar_prefetch = 0 : i64, scratch_operands = 0 : i64, tpu.core_type = #tpu.core_type<tc>, window_params = [{transform_indices = @transform_0, window_bounds = array<i64: 128, 8>}, {pipeline_mode = #tpu.pipeline_mode<synchronous>, transform_indices = @transform_1, window_bounds = array<i64: 64, 8>}, {pipeline_mode = #tpu.pipeline_mode<synchronous>, transform_indices = @transform_2, window_bounds = array<i64: 64, 1>}, {pipeline_mode = #tpu.pipeline_mode<synchronous>, transform_indices = @transform_3, window_bounds = array<i64: 64, 64>}, {pipeline_mode = #tpu.pipeline_mode<synchronous>, transform_indices = @transform_4, window_bounds = array<i64: 64, 1>}, {pipeline_mode = #tpu.pipeline_mode<synchronous>, transform_indices = @transform_5, window_bounds = array<i64: 8, 64>}, {pipeline_mode = #tpu.pipeline_mode<synchronous>, transform_indices = @transform_6, window_bounds = array<i64: 8, 1>}, {transform_indices = @transform_7, window_bounds = array<i64: 8, 128>}]} {
    %c0 = arith.constant 0 : index
    %c0_0 = arith.constant 0 : index
    %0 = vector.load %arg1[%c0, %c0_0] : memref<128x8xf32, #tpu.memory_space<vmem>>, vector<128x8xf32>
    %1 = tpu.transpose %0, [1, 0] : vector<128x8xf32> -> vector<8x128xf32>
    %c0_1 = arith.constant 0 : index
    %c0_2 = arith.constant 0 : index
    %2 = vector.load %arg2[%c0_1, %c0_2] : memref<64x8xf32, #tpu.memory_space<vmem>>, vector<64x8xf32>
    %cst = arith.constant dense<0.000000e+00> : vector<64x128xf32>
    %3 = tpu.matmul %2, %1, %cst {dimension_numbers = #tpu.dot_dimension_numbers<[1], [0], [0], [1], [0, 0, 1, 1], [], []>} : vector<64x8xf32>, vector<8x128xf32>, vector<64x128xf32> -> vector<64x128xf32>
    %c0_3 = arith.constant 0 : index
    %c0_4 = arith.constant 0 : index
    %4 = vector.load %arg3[%c0_3, %c0_4] : memref<64x1xf32, #tpu.memory_space<vmem>>, vector<64x1xf32>
    %5 = vector.broadcast %4 : vector<64x1xf32> to vector<64x128xf32>
    %6 = arith.addf %3, %5 : vector<64x128xf32>
    %cst_5 = arith.constant 0.000000e+00 : f32
    %7 = vector.broadcast %cst_5 : f32 to vector<64x128xf32>
    %8 = arith.maximumf %6, %7 : vector<64x128xf32>
    %c0_6 = arith.constant 0 : index
    %c0_7 = arith.constant 0 : index
    %9 = vector.load %arg4[%c0_6, %c0_7] : memref<64x64xf32, #tpu.memory_space<vmem>>, vector<64x64xf32>
    %cst_8 = arith.constant dense<0.000000e+00> : vector<64x128xf32>
    %10 = tpu.matmul %9, %8, %cst_8 {dimension_numbers = #tpu.dot_dimension_numbers<[1], [0], [0], [1], [0, 0, 1, 1], [], []>} : vector<64x64xf32>, vector<64x128xf32>, vector<64x128xf32> -> vector<64x128xf32>
    %c0_9 = arith.constant 0 : index
    %c0_10 = arith.constant 0 : index
    %11 = vector.load %arg5[%c0_9, %c0_10] : memref<64x1xf32, #tpu.memory_space<vmem>>, vector<64x1xf32>
    %12 = vector.broadcast %11 : vector<64x1xf32> to vector<64x128xf32>
    %13 = arith.addf %10, %12 : vector<64x128xf32>
    %cst_11 = arith.constant 0.000000e+00 : f32
    %14 = vector.broadcast %cst_11 : f32 to vector<64x128xf32>
    %15 = arith.maximumf %13, %14 : vector<64x128xf32>
    %c0_12 = arith.constant 0 : index
    %c0_13 = arith.constant 0 : index
    %16 = vector.load %arg6[%c0_12, %c0_13] : memref<8x64xf32, #tpu.memory_space<vmem>>, vector<8x64xf32>
    %cst_14 = arith.constant dense<0.000000e+00> : vector<8x128xf32>
    %17 = tpu.matmul %16, %15, %cst_14 {dimension_numbers = #tpu.dot_dimension_numbers<[1], [0], [0], [1], [0, 0, 1, 1], [], []>} : vector<8x64xf32>, vector<64x128xf32>, vector<8x128xf32> -> vector<8x128xf32>
    %c0_15 = arith.constant 0 : index
    %c0_16 = arith.constant 0 : index
    %18 = vector.load %arg7[%c0_15, %c0_16] : memref<8x1xf32, #tpu.memory_space<vmem>>, vector<8x1xf32>
    %19 = vector.broadcast %18 : vector<8x1xf32> to vector<8x128xf32>
    %20 = arith.addf %17, %19 : vector<8x128xf32>
    %c0_17 = arith.constant 0 : index
    %c0_18 = arith.constant 0 : index
    %21 = vector.load %arg8[%c0_17, %c0_18] : memref<8x128xf32, #tpu.memory_space<vmem>>, vector<8x128xf32>
    tpu.vector_store %arg8[%c0_17, %c0_18], %20 {strides = array<i32>} : memref<8x128xf32, #tpu.memory_space<vmem>>, vector<8x128xf32>,
    return
  }
  func.func @transform_0(%arg0: i32) -> (i32, i32) {
    %c0_i32 = arith.constant 0 : i32
    %c0_i32_0 = arith.constant 0 : i32
    return %arg0, %c0_i32 : i32, i32
  }
  func.func @transform_1(%arg0: i32) -> (i32, i32) {
    %c0_i32 = arith.constant 0 : i32
    %c0_i32_0 = arith.constant 0 : i32
    %c0_i32_1 = arith.constant 0 : i32
    return %c0_i32, %c0_i32_0 : i32, i32
  }
  func.func @transform_2(%arg0: i32) -> (i32, i32) {
    %c0_i32 = arith.constant 0 : i32
    %c0_i32_0 = arith.constant 0 : i32
    %c0_i32_1 = arith.constant 0 : i32
    return %c0_i32, %c0_i32_0 : i32, i32
  }
  func.func @transform_3(%arg0: i32) -> (i32, i32) {
    %c0_i32 = arith.constant 0 : i32
    %c0_i32_0 = arith.constant 0 : i32
    %c0_i32_1 = arith.constant 0 : i32
    return %c0_i32, %c0_i32_0 : i32, i32
  }
  func.func @transform_4(%arg0: i32) -> (i32, i32) {
    %c0_i32 = arith.constant 0 : i32
    %c0_i32_0 = arith.constant 0 : i32
    %c0_i32_1 = arith.constant 0 : i32
    return %c0_i32, %c0_i32_0 : i32, i32
  }
  func.func @transform_5(%arg0: i32) -> (i32, i32) {
    %c0_i32 = arith.constant 0 : i32
    %c0_i32_0 = arith.constant 0 : i32
    %c0_i32_1 = arith.constant 0 : i32
    return %c0_i32, %c0_i32_0 : i32, i32
  }
  func.func @transform_6(%arg0: i32) -> (i32, i32) {
    %c0_i32 = arith.constant 0 : i32
    %c0_i32_0 = arith.constant 0 : i32
    %c0_i32_1 = arith.constant 0 : i32
    return %c0_i32, %c0_i32_0 : i32, i32
  }
  func.func @transform_7(%arg0: i32) -> (i32, i32) {
    %c0_i32 = arith.constant 0 : i32
    %c0_i32_0 = arith.constant 0 : i32
    return %c0_i32, %arg0 : i32, i32
  }
}

</mosaic_0001>

<llo_original>
// kernel: network_forward_lane_dense.1
$region0: #{network_forward_lane_dense.1}
  #allocation0 [shape = 'u32[]', space=smem, size = 0x4, offset = 0x4, fixed_abs, tag = 'smem constant byte address 0x4 - core index']
  #allocation1 [shape = 'u32[144,128]{1,0:T(1,128)}', space=vmem, size = 0x12000, scoped, tag = 'internal scratch']
  %s0 = inlined_call_operand.vmem [shape: f32[128,8], index: 0, kind: input, shape index: {}]
  %s1 = inlined_call_operand.vmem [shape: f32[64,8], index: 1, kind: input, shape index: {}]
  %s2 = inlined_call_operand.vmem [shape: f32[64,1], index: 2, kind: input, shape index: {}]
  %s3 = inlined_call_operand.vmem [shape: f32[64,64], index: 3, kind: input, shape index: {}]
  %s4 = inlined_call_operand.vmem [shape: f32[64,1], index: 4, kind: input, shape index: {}]
  %s5 = inlined_call_operand.vmem [shape: f32[8,64], index: 5, kind: input, shape index: {}]
  %s6 = inlined_call_operand.vmem [shape: f32[8,1], index: 6, kind: input, shape index: {}]
  %s7 = inlined_call_operand.hbm [shape: f32[8,128], index: 7, kind: output, shape index: {}]
  %s8 = sld [smem:[#allocation0]]
  $region38: #{network_forward_lane_dense.1} parent=0
    _
  %s10 = ssub.s32 1, %s8
  %s11 = scalar_select 0, %s10, %s8
  $region1: #{network_forward_lane_dense.1} parent=0
    #allocation2 [shape = 'u8[4096]{0}', space=vmem, size = 0x1000, scoped, tag = 'output window, operand 0, single buffered']
    #allocation3 [shape = 's32[1]{0}', space=sflag, size = 0x4, scoped, tag = 'scoped memory for network_forward_lane_dense.1']
    %12 = vsyncpa [#allocation3], 0
    // Predicated region
    $region2: #{network_forward_lane_dense.1} parent=1 // pred_check
      _
    $region3: #{network_forward_lane_dense.1} parent=1 // pred_check_branch
      %14 = sbr.rel (0) target = $region5
    $region4: #{network_forward_lane_dense.1} parent=1 // pred_region
      _
    $region5: #{network_forward_lane_dense.1} parent=1 // pred_fallthru
      _
    // Predicated region
    $region6: #{network_forward_lane_dense.1} parent=1 // pred_check
      _
    $region7: #{network_forward_lane_dense.1} parent=1 // pred_check_branch
      %16 = sbr.rel (0) target = $region9
    $region8: #{network_forward_lane_dense.1} parent=1 // pred_region
      _
    $region9: #{network_forward_lane_dense.1} parent=1 // pred_fallthru
      _
    // Predicated region
    $region10: #{network_forward_lane_dense.1} parent=1 // pred_check
      _
    $region11: #{network_forward_lane_dense.1} parent=1 // pred_check_branch
      %18 = sbr.rel (0) target = $region13
    $region12: #{network_forward_lane_dense.1} parent=1 // pred_region
      _
    $region13: #{network_forward_lane_dense.1} parent=1 // pred_fallthru
      _
    // Predicated region
    $region14: #{network_forward_lane_dense.1} parent=1 // pred_check
      _
    $region15: #{network_forward_lane_dense.1} parent=1 // pred_check_branch
      %20 = sbr.rel (0) target = $region17
    $region16: #{network_forward_lane_dense.1} parent=1 // pred_region
      _
    $region17: #{network_forward_lane_dense.1} parent=1 // pred_fallthru
      _
    // Predicated region
    $region18: #{network_forward_lane_dense.1} parent=1 // pred_check
      _
    $region19: #{network_forward_lane_dense.1} parent=1 // pred_check_branch
      %22 = sbr.rel (0) target = $region21
    $region20: #{network_forward_lane_dense.1} parent=1 // pred_region
      _
    $region21: #{network_forward_lane_dense.1} parent=1 // pred_fallthru
      _
    // Predicated region
    $region22: #{network_forward_lane_dense.1} parent=1 // pred_check
      _
    $region23: #{network_forward_lane_dense.1} parent=1 // pred_check_branch
      %24 = sbr.rel (0) target = $region25
    $region24: #{network_forward_lane_dense.1} parent=1 // pred_region
      _
    $region25: #{network_forward_lane_dense.1} parent=1 // pred_fallthru
      _
    // Predicated region
    $region26: #{network_forward_lane_dense.1} parent=1 // pred_check
      _
    $region27: #{network_forward_lane_dense.1} parent=1 // pred_check_branch
      %26 = sbr.rel (0) target = $region29
    $region28: #{network_forward_lane_dense.1} parent=1 // pred_region
      _
    $region29: #{network_forward_lane_dense.1} parent=1 // pred_fallthru
      _
    %v27 = vld [vmem:[%s0] sm:$0xff]
    %v28 = vld [vmem:[%s0 + $0x8] sm:$0xff]
    %v29 = vld [vmem:[%s0 + $0x10] sm:$0xff]
    %v30 = vld [vmem:[%s0 + $0x18] sm:$0xff]
    %v31 = vld [vmem:[%s0 + $0x20] sm:$0xff]
    %v32 = vld [vmem:[%s0 + $0x28] sm:$0xff]
    %v33 = vld [vmem:[%s0 + $0x30] sm:$0xff]
    %v34 = vld [vmem:[%s0 + $0x38] sm:$0xff]
    %v35 = vld [vmem:[%s0 + $0x40] sm:$0xff]
    %v36 = vld [vmem:[%s0 + $0x48] sm:$0xff]
    %v37 = vld [vmem:[%s0 + $0x50] sm:$0xff]
    %v38 = vld [vmem:[%s0 + $0x58] sm:$0xff]
    %v39 = vld [vmem:[%s0 + $0x60] sm:$0xff]
    %v40 = vld [vmem:[%s0 + $0x68] sm:$0xff]
    %v41 = vld [vmem:[%s0 + $0x70] sm:$0xff]
    %v42 = vld [vmem:[%s0 + $0x78] sm:$0xff]
    %v43 = vld [vmem:[%s1] sm:$0xff]
    %v44 = vld [vmem:[%s1 + $0x8] sm:$0xff]
    %v45 = vld [vmem:[%s1 + $0x10] sm:$0xff]
    %v46 = vld [vmem:[%s1 + $0x18] sm:$0xff]
    %v47 = vld [vmem:[%s1 + $0x20] sm:$0xff]
    %v48 = vld [vmem:[%s1 + $0x28] sm:$0xff]
    %v49 = vld [vmem:[%s1 + $0x30] sm:$0xff]
    %v50 = vld [vmem:[%s1 + $0x38] sm:$0xff]
    %v51 = vld [vmem:[%s2] sm:$0xff]
    %v52 = vld [vmem:[%s2 + $0x8] sm:$0xff]
    %v53 = vld [vmem:[%s2 + $0x10] sm:$0xff]
    %v54 = vld [vmem:[%s2 + $0x18] sm:$0xff]
    %v55 = vld [vmem:[%s2 + $0x20] sm:$0xff]
    %v56 = vld [vmem:[%s2 + $0x28] sm:$0xff]
    %v57 = vld [vmem:[%s2 + $0x30] sm:$0xff]
    %v58 = vld [vmem:[%s2 + $0x38] sm:$0xff]
    %60 = vset.pattern.permute.xlu0 0
    %61 = vperm.xlu0 %60, %v51
    %v62 = vpop.permute.xlu0 %61
    %65 = vset.pattern.permute.xlu0 0
    %66 = vperm.xlu0 %65, %v52
    %v67 = vpop.permute.xlu0 %66
    %70 = vset.pattern.permute.xlu0 0
    %71 = vperm.xlu0 %70, %v53
    %v72 = vpop.permute.xlu0 %71
    %75 = vset.pattern.permute.xlu0 0
    %76 = vperm.xlu0 %75, %v54
    %v77 = vpop.permute.xlu0 %76
    %80 = vset.pattern.permute.xlu0 0
    %81 = vperm.xlu0 %80, %v55
    %v82 = vpop.permute.xlu0 %81
    %85 = vset.pattern.permute.xlu0 0
    %86 = vperm.xlu0 %85, %v56
    %v87 = vpop.permute.xlu0 %86
    %90 = vset.pattern.permute.xlu0 0
    %91 = vperm.xlu0 %90, %v57
    %v92 = vpop.permute.xlu0 %91
    %95 = vset.pattern.permute.xlu0 0
    %96 = vperm.xlu0 %95, %v58
    %v97 = vpop.permute.xlu0 %96
    %vm99 = vcmask 64512
    %v101 = vsel %vm99, %v43, 0
    %v104 = vsel %vm99, %v44, 0
    %v107 = vsel %vm99, %v45, 0
    %v110 = vsel %vm99, %v46, 0
    %v113 = vsel %vm99, %v47, 0
    %v116 = vsel %vm99, %v48, 0
    %v119 = vsel %vm99, %v49, 0
    %v122 = vsel %vm99, %v50, 0
    %v125 = vsel %vm99, %v27, 0
    %v128 = vsel %vm99, %v28, 0
    %v131 = vsel %vm99, %v29, 0
    %v134 = vsel %vm99, %v30, 0
    %v137 = vsel %vm99, %v31, 0
    %v140 = vsel %vm99, %v32, 0
    %v143 = vsel %vm99, %v33, 0
    %v146 = vsel %vm99, %v34, 0
    %v149 = vsel %vm99, %v35, 0
    %v152 = vsel %vm99, %v36, 0
    %v155 = vsel %vm99, %v37, 0
    %v158 = vsel %vm99, %v38, 0
    %v161 = vsel %vm99, %v39, 0
    %v164 = vsel %vm99, %v40, 0
    %v167 = vsel %vm99, %v41, 0
    %v170 = vsel %vm99, %v42, 0
    %172 = vmatprep.subr.mxu0 0.0
    %173 = vmatpush1.xpose.msra.mxu0 %v170
    %174 = vmatprep.subr.mxu0 0.0
    %175 = vmatpush1.xpose.msra.mxu0 %v167
    %176 = vmatprep.subr.mxu0 0.0
    %177 = vmatpush1.xpose.msra.mxu0 %v164
    %178 = vmatprep.subr.mxu0 0.0
    %179 = vmatpush1.xpose.msra.mxu0 %v161
    %180 = vmatprep.subr.mxu0 0.0
    %181 = vmatpush1.xpose.msra.mxu0 %v158
    %182 = vmatprep.subr.mxu0 0.0
    %183 = vmatpush1.xpose.msra.mxu0 %v155
    %184 = vmatprep.subr.mxu0 0.0
    %185 = vmatpush1.xpose.msra.mxu0 %v152
    %186 = vmatprep.subr.mxu0 0.0
    %187 = vmatpush1.xpose.msra.mxu0 %v149
    %188 = vmatprep.subr.mxu0 0.0
    %189 = vmatpush1.xpose.msra.mxu0 %v146
    %190 = vmatprep.subr.mxu0 0.0
    %191 = vmatpush1.xpose.msra.mxu0 %v143
    %192 = vmatprep.subr.mxu0 0.0
    %193 = vmatpush1.xpose.msra.mxu0 %v140
    %194 = vmatprep.subr.mxu0 0.0
    %195 = vmatpush1.xpose.msra.mxu0 %v137
    %196 = vmatprep.subr.mxu0 0.0
    %197 = vmatpush1.xpose.msra.mxu0 %v134
    %198 = vmatprep.subr.mxu0 0.0
    %199 = vmatpush1.xpose.msra.mxu0 %v131
    %200 = vmatprep.subr.mxu0 0.0
    %201 = vmatpush1.xpose.msra.mxu0 %v128
    %202 = vmatprep.subr.mxu0 0.0
    %203 = vmatpush1.xpose.msra.mxu0 %v125
    %204 = vmatprep.subr.mxu0 0.0
    %205 = vmatpush2.xpose.msra.mxu0 0.0
    %206 = vmatprep.subr.mxu0 0.0
    %207 = vmatpush2.xpose.msra.mxu0 0.0
    %208 = vmatprep.subr.mxu0 0.0
    %209 = vmatpush2.xpose.msra.mxu0 0.0
    %210 = vmatprep.subr.mxu0 0.0
    %211 = vmatpush2.xpose.msra.mxu0 0.0
    %212 = vmatprep.subr.mxu0 0.0
    %213 = vmatpush2.xpose.msra.mxu0 0.0
    %214 = vmatprep.subr.mxu0 0.0
    %215 = vmatpush2.xpose.msra.mxu0 0.0
    %216 = vmatprep.subr.mxu0 0.0
    %217 = vmatpush2.xpose.msra.mxu0 0.0
    %218 = vmatprep.subr.mxu0 0.0
    %219 = vmatpush2.xpose.msra.mxu0 0.0
    %220 = vmatprep.subr.mxu0 0.0
    %221 = vmatpush2.xpose.msra.mxu0 0.0
    %222 = vmatprep.subr.mxu0 0.0
    %223 = vmatpush2.xpose.msra.mxu0 0.0
    %224 = vmatprep.subr.mxu0 0.0
    %225 = vmatpush2.xpose.msra.mxu0 0.0
    %226 = vmatprep.subr.mxu0 0.0
    %227 = vmatpush2.xpose.msra.mxu0 0.0
    %228 = vmatprep.subr.mxu0 0.0
    %229 = vmatpush2.xpose.msra.mxu0 0.0
    %230 = vmatprep.subr.mxu0 0.0
    %231 = vmatpush2.xpose.msra.mxu0 0.0
    %232 = vmatprep.subr.mxu0 0.0
    %233 = vmatpush2.xpose.msra.mxu0 0.0
    %234 = vmatprep.subr.mxu0 0.0
    %235 = vmatpush2.xpose.msra.mxu0 0.0
    %236 = vmatprep.mubr.f32.mxu0 0.0
    %237 = vmatmul.mubr.f32.gmra.mxu0 %v101
    %v238 = vpop.f32.mrf.mxu0
    %v239 = vadd.f32 %v62, %v238
    %v240 = vpop.f32.mrf.mxu0
    %241 = vmatprep.mubr.f32.mxu0 0.0
    %242 = vmatmul.mubr.f32.gmra.mxu0 %v104
    %v243 = vpop.f32.mrf.mxu0
    %v244 = vadd.f32 %v67, %v243
    %v245 = vpop.f32.mrf.mxu0
    %246 = vmatprep.mubr.f32.mxu0 0.0
    %247 = vmatmul.mubr.f32.gmra.mxu0 %v107
    %v248 = vpop.f32.mrf.mxu0
    %v249 = vadd.f32 %v72, %v248
    %v250 = vpop.f32.mrf.mxu0
    %251 = vmatprep.mubr.f32.mxu0 0.0
    %252 = vmatmul.mubr.f32.gmra.mxu0 %v110
    %v253 = vpop.f32.mrf.mxu0
    %v254 = vadd.f32 %v77, %v253
    %v255 = vpop.f32.mrf.mxu0
    %256 = vmatprep.mubr.f32.mxu0 0.0
    %257 = vmatmul.mubr.f32.gmra.mxu0 %v113
    %v258 = vpop.f32.mrf.mxu0
    %v259 = vadd.f32 %v82, %v258
    %v260 = vpop.f32.mrf.mxu0
    %261 = vmatprep.mubr.f32.mxu0 0.0
    %262 = vmatmul.mubr.f32.gmra.mxu0 %v116
    %v263 = vpop.f32.mrf.mxu0
    %v264 = vadd.f32 %v87, %v263
    %v265 = vpop.f32.mrf.mxu0
    %266 = vmatprep.mubr.f32.mxu0 0.0
    %267 = vmatmul.mubr.f32.gmra.mxu0 %v119
    %v268 = vpop.f32.mrf.mxu0
    %v269 = vadd.f32 %v92, %v268
    %v270 = vpop.f32.mrf.mxu0
    %271 = vmatprep.mubr.f32.mxu0 0.0
    %272 = vmatmul.mubr.f32.gmra.mxu0 %v122
    %v273 = vpop.f32.mrf.mxu0
    %v274 = vadd.f32 %v97, %v273
    %v275 = vpop.f32.mrf.mxu0
    %276 = vdwg.mxu0
    %v277 = vmax.f32 %v239, 0.0
    %v278 = vmax.f32 %v244, 0.0
    %v279 = vmax.f32 %v249, 0.0
    %v280 = vmax.f32 %v254, 0.0
    %v281 = vmax.f32 %v259, 0.0
    %v282 = vmax.f32 %v264, 0.0
    %v283 = vmax.f32 %v269, 0.0
    %v284 = vmax.f32 %v274, 0.0
    %v285 = vld [vmem:[%s3] sm:$0xff]
    %v286 = vld [vmem:[%s3 + $0x8] sm:$0xff]
    %v287 = vld [vmem:[%s3 + $0x10] sm:$0xff]
    %v288 = vld [vmem:[%s3 + $0x18] sm:$0xff]
    %v289 = vld [vmem:[%s3 + $0x20] sm:$0xff]
    %v290 = vld [vmem:[%s3 + $0x28] sm:$0xff]
    %v291 = vld [vmem:[%s3 + $0x30] sm:$0xff]
    %v292 = vld [vmem:[%s3 + $0x38] sm:$0xff]
    %v293 = vld [vmem:[%s4] sm:$0xff]
    %v294 = vld [vmem:[%s4 + $0x8] sm:$0xff]
    %v295 = vld [vmem:[%s4 + $0x10] sm:$0xff]
    %v296 = vld [vmem:[%s4 + $0x18] sm:$0xff]
    %v297 = vld [vmem:[%s4 + $0x20] sm:$0xff]
    %v298 = vld [vmem:[%s4 + $0x28] sm:$0xff]
    %v299 = vld [vmem:[%s4 + $0x30] sm:$0xff]
    %v300 = vld [vmem:[%s4 + $0x38] sm:$0xff]
    %302 = vset.pattern.permute.xlu0 0
    %303 = vperm.xlu0 %302, %v293
    %v304 = vpop.permute.xlu0 %303
    %307 = vset.pattern.permute.xlu0 0
    %308 = vperm.xlu0 %307, %v294
    %v309 = vpop.permute.xlu0 %308
    %312 = vset.pattern.permute.xlu0 0
    %313 = vperm.xlu0 %312, %v295
    %v314 = vpop.permute.xlu0 %313
    %317 = vset.pattern.permute.xlu0 0
    %318 = vperm.xlu0 %317, %v296
    %v319 = vpop.permute.xlu0 %318
    %322 = vset.pattern.permute.xlu0 0
    %323 = vperm.xlu0 %322, %v297
    %v324 = vpop.permute.xlu0 %323
    %327 = vset.pattern.permute.xlu0 0
    %328 = vperm.xlu0 %327, %v298
    %v329 = vpop.permute.xlu0 %328
    %332 = vset.pattern.permute.xlu0 0
    %333 = vperm.xlu0 %332, %v299
    %v334 = vpop.permute.xlu0 %333
    %337 = vset.pattern.permute.xlu0 0
    %338 = vperm.xlu0 %337, %v300
    %v339 = vpop.permute.xlu0 %338
    %vm341 = vcmask 523264
    %v343 = vsel %vm341, %v285, 0
    %v346 = vsel %vm341, %v286, 0
    %v349 = vsel %vm341, %v287, 0
    %v352 = vsel %vm341, %v288, 0
    %v355 = vsel %vm341, %v289, 0
    %v358 = vsel %vm341, %v290, 0
    %v361 = vsel %vm341, %v291, 0
    %v364 = vsel %vm341, %v292, 0
    %366 = vmatprep.subr.mxu0 0.0
    %367 = vmatpush1.msra.mxu0 0.0
    %368 = vmatprep.subr.mxu0 0.0
    %369 = vmatpush1.msra.mxu0 0.0
    %370 = vmatprep.subr.mxu0 0.0
    %371 = vmatpush1.msra.mxu0 0.0
    %372 = vmatprep.subr.mxu0 0.0
    %373 = vmatpush1.msra.mxu0 0.0
    %374 = vmatprep.subr.mxu0 0.0
    %375 = vmatpush1.msra.mxu0 0.0
    %376 = vmatprep.subr.mxu0 0.0
    %377 = vmatpush1.msra.mxu0 0.0
    %378 = vmatprep.subr.mxu0 0.0
    %379 = vmatpush1.msra.mxu0 0.0
    %380 = vmatprep.subr.mxu0 0.0
    %381 = vmatpush1.msra.mxu0 0.0
    %382 = vmatprep.subr.mxu0 0.0
    %383 = vmatpush1.msra.mxu0 %v284
    %384 = vmatprep.subr.mxu0 0.0
    %385 = vmatpush1.msra.mxu0 %v283
    %386 = vmatprep.subr.mxu0 0.0
    %387 = vmatpush1.msra.mxu0 %v282
    %388 = vmatprep.subr.mxu0 0.0
    %389 = vmatpush1.msra.mxu0 %v281
    %390 = vmatprep.subr.mxu0 0.0
    %391 = vmatpush1.msra.mxu0 %v280
    %392 = vmatprep.subr.mxu0 0.0
    %393 = vmatpush1.msra.mxu0 %v279
    %394 = vmatprep.subr.mxu0 0.0
    %395 = vmatpush1.msra.mxu0 %v278
    %396 = vmatprep.subr.mxu0 0.0
    %397 = vmatpush1.msra.mxu0 %v277
    %398 = vmatprep.subr.mxu0 0.0
    %399 = vmatpush2.msra.mxu0 0.0
    %400 = vmatprep.subr.mxu0 0.0
    %401 = vmatpush2.msra.mxu0 0.0
    %402 = vmatprep.subr.mxu0 0.0
    %403 = vmatpush2.msra.mxu0 0.0
    %404 = vmatprep.subr.mxu0 0.0
    %405 = vmatpush2.msra.mxu0 0.0
    %406 = vmatprep.subr.mxu0 0.0
    %407 = vmatpush2.msra.mxu0 0.0
    %408 = vmatprep.subr.mxu0 0.0
    %409 = vmatpush2.msra.mxu0 0.0
    %410 = vmatprep.subr.mxu0 0.0
    %411 = vmatpush2.msra.mxu0 0.0
    %412 = vmatprep.subr.mxu0 0.0
    %413 = vmatpush2.msra.mxu0 0.0
    %414 = vmatprep.subr.mxu0 0.0
    %415 = vmatpush2.msra.mxu0 0.0
    %416 = vmatprep.subr.mxu0 0.0
    %417 = vmatpush2.msra.mxu0 0.0
    %418 = vmatprep.subr.mxu0 0.0
    %419 = vmatpush2.msra.mxu0 0.0
    %420 = vmatprep.subr.mxu0 0.0
    %421 = vmatpush2.msra.mxu0 0.0
    %422 = vmatprep.subr.mxu0 0.0
    %423 = vmatpush2.msra.mxu0 0.0
    %424 = vmatprep.subr.mxu0 0.0
    %425 = vmatpush2.msra.mxu0 0.0
    %426 = vmatprep.subr.mxu0 0.0
    %427 = vmatpush2.msra.mxu0 0.0
    %428 = vmatprep.subr.mxu0 0.0
    %429 = vmatpush2.msra.mxu0 0.0
    %430 = vmatprep.mubr.f32.mxu0 0.0
    %431 = vmatmul.mubr.f32.gmra.mxu0 %v343
    %v432 = vpop.f32.mrf.mxu0
    %v433 = vadd.f32 %v304, %v432
    %v434 = vpop.f32.mrf.mxu0
    %435 = vmatprep.mubr.f32.mxu0 0.0
    %436 = vmatmul.mubr.f32.gmra.mxu0 %v346
    %v437 = vpop.f32.mrf.mxu0
    %v438 = vadd.f32 %v309, %v437
    %v439 = vpop.f32.mrf.mxu0
    %440 = vmatprep.mubr.f32.mxu0 0.0
    %441 = vmatmul.mubr.f32.gmra.mxu0 %v349
    %v442 = vpop.f32.mrf.mxu0
    %v443 = vadd.f32 %v314, %v442
    %v444 = vpop.f32.mrf.mxu0
    %445 = vmatprep.mubr.f32.mxu0 0.0
    %446 = vmatmul.mubr.f32.gmra.mxu0 %v352
    %v447 = vpop.f32.mrf.mxu0
    %v448 = vadd.f32 %v319, %v447
    %v449 = vpop.f32.mrf.mxu0
    %450 = vmatprep.mubr.f32.mxu0 0.0
    %451 = vmatmul.mubr.f32.gmra.mxu0 %v355
    %v452 = vpop.f32.mrf.mxu0
    %v453 = vadd.f32 %v324, %v452
    %v454 = vpop.f32.mrf.mxu0
    %455 = vmatprep.mubr.f32.mxu0 0.0
    %456 = vmatmul.mubr.f32.gmra.mxu0 %v358
    %v457 = vpop.f32.mrf.mxu0
    %v458 = vadd.f32 %v329, %v457
    %v459 = vpop.f32.mrf.mxu0
    %460 = vmatprep.mubr.f32.mxu0 0.0
    %461 = vmatmul.mubr.f32.gmra.mxu0 %v361
    %v462 = vpop.f32.mrf.mxu0
    %v463 = vadd.f32 %v334, %v462
    %v464 = vpop.f32.mrf.mxu0
    %465 = vmatprep.mubr.f32.mxu0 0.0
    %466 = vmatmul.mubr.f32.gmra.mxu0 %v364
    %v467 = vpop.f32.mrf.mxu0
    %v468 = vadd.f32 %v339, %v467
    %v469 = vpop.f32.mrf.mxu0
    %470 = vdwg.mxu0
    %v471 = vmax.f32 %v433, 0.0
    %v472 = vmax.f32 %v438, 0.0
    %v473 = vmax.f32 %v443, 0.0
    %v474 = vmax.f32 %v448, 0.0
    %v475 = vmax.f32 %v453, 0.0
    %v476 = vmax.f32 %v458, 0.0
    %v477 = vmax.f32 %v463, 0.0
    %v478 = vmax.f32 %v468, 0.0
    %v479 = vld [vmem:[%s5] sm:$0xff]
    %v480 = vld [vmem:[%s6] sm:$0xff]
    %482 = vset.pattern.permute.xlu0 0
    %483 = vperm.xlu0 %482, %v480
    %v484 = vpop.permute.xlu0 %483
    %v487 = vsel %vm341, %v479, 0
    %489 = vmatprep.subr.mxu0 0.0
    %490 = vmatpush1.msra.mxu0 0.0
    %491 = vmatprep.subr.mxu0 0.0
    %492 = vmatpush1.msra.mxu0 0.0
    %493 = vmatprep.subr.mxu0 0.0
    %494 = vmatpush1.msra.mxu0 0.0
    %495 = vmatprep.subr.mxu0 0.0
    %496 = vmatpush1.msra.mxu0 0.0
    %497 = vmatprep.subr.mxu0 0.0
    %498 = vmatpush1.msra.mxu0 0.0
    %499 = vmatprep.subr.mxu0 0.0
    %500 = vmatpush1.msra.mxu0 0.0
    %501 = vmatprep.subr.mxu0 0.0
    %502 = vmatpush1.msra.mxu0 0.0
    %503 = vmatprep.subr.mxu0 0.0
    %504 = vmatpush1.msra.mxu0 0.0
    %505 = vmatprep.subr.mxu0 0.0
    %506 = vmatpush1.msra.mxu0 %v478
    %507 = vmatprep.subr.mxu0 0.0
    %508 = vmatpush1.msra.mxu0 %v477
    %509 = vmatprep.subr.mxu0 0.0
    %510 = vmatpush1.msra.mxu0 %v476
    %511 = vmatprep.subr.mxu0 0.0
    %512 = vmatpush1.msra.mxu0 %v475
    %513 = vmatprep.subr.mxu0 0.0
    %514 = vmatpush1.msra.mxu0 %v474
    %515 = vmatprep.subr.mxu0 0.0
    %516 = vmatpush1.msra.mxu0 %v473
    %517 = vmatprep.subr.mxu0 0.0
    %518 = vmatpush1.msra.mxu0 %v472
    %519 = vmatprep.subr.mxu0 0.0
    %520 = vmatpush1.msra.mxu0 %v471
    %521 = vmatprep.subr.mxu0 0.0
    %522 = vmatpush2.msra.mxu0 0.0
    %523 = vmatprep.subr.mxu0 0.0
    %524 = vmatpush2.msra.mxu0 0.0
    %525 = vmatprep.subr.mxu0 0.0
    %526 = vmatpush2.msra.mxu0 0.0
    %527 = vmatprep.subr.mxu0 0.0
    %528 = vmatpush2.msra.mxu0 0.0
    %529 = vmatprep.subr.mxu0 0.0
    %530 = vmatpush2.msra.mxu0 0.0
    %531 = vmatprep.subr.mxu0 0.0
    %532 = vmatpush2.msra.mxu0 0.0
    %533 = vmatprep.subr.mxu0 0.0
    %534 = vmatpush2.msra.mxu0 0.0
    %535 = vmatprep.subr.mxu0 0.0
    %536 = vmatpush2.msra.mxu0 0.0
    %537 = vmatprep.subr.mxu0 0.0
    %538 = vmatpush2.msra.mxu0 0.0
    %539 = vmatprep.subr.mxu0 0.0
    %540 = vmatpush2.msra.mxu0 0.0
    %541 = vmatprep.subr.mxu0 0.0
    %542 = vmatpush2.msra.mxu0 0.0
    %543 = vmatprep.subr.mxu0 0.0
    %544 = vmatpush2.msra.mxu0 0.0
    %545 = vmatprep.subr.mxu0 0.0
    %546 = vmatpush2.msra.mxu0 0.0
    %547 = vmatprep.subr.mxu0 0.0
    %548 = vmatpush2.msra.mxu0 0.0
    %549 = vmatprep.subr.mxu0 0.0
    %550 = vmatpush2.msra.mxu0 0.0
    %551 = vmatprep.subr.mxu0 0.0
    %552 = vmatpush2.msra.mxu0 0.0
    %553 = vmatprep.mubr.f32.mxu0 0.0
    %554 = vmatmul.mubr.f32.gmra.mxu0 %v487
    %v555 = vpop.f32.mrf.mxu0
    %v556 = vadd.f32 %v484, %v555
    %v557 = vpop.f32.mrf.mxu0
    %558 = vdwg.mxu0
    %559 = vst [vmem:[#allocation2] sm:$0xff] %v556
    // Predicated region
    $region30: #{network_forward_lane_dense.1} parent=1 // pred_check
      _
    $region31: #{network_forward_lane_dense.1} parent=1 // pred_check_branch
      %561 = sbr.rel (0) target = $region33
    $region32: #{network_forward_lane_dense.1} parent=1 // pred_region
      %s563 = ssub.s32 128, 128
      %564 = vsyncadd [#allocation3], %s563
      %s566 = sshll.u32 [#allocation2], 4
      %s567 = int_to_ptr.vmem [resolvable:$true] %s566
      %569 = dma.vmem_to_hbm [thread:$0]  %s567, 128, %s7, [#allocation3]
    $region33: #{network_forward_lane_dense.1} parent=1 // pred_fallthru
      _
    // Predicated region
    $region34: #{network_forward_lane_dense.1} parent=1 // pred_check
      _
    $region35: #{network_forward_lane_dense.1} parent=1 // pred_check_branch
      %571 = sbr.rel (0) target = $region37
    $region36: #{network_forward_lane_dense.1} parent=1 // pred_region
      %572 = dma.done [#allocation3], 128
    $region37: #{network_forward_lane_dense.1} parent=1 // pred_fallthru
      _
    %573 = vsyncpa [#allocation3], 1

</llo_original>
